<compile_context>
chip_gen: v6e
topology: v6e:2x2x1
jax: 0.10.0
libtpu: 0.0.40
codegen_flags: <defaults>
</compile_context>

<pallas_src>
import functools
import math

import jax
import jax.numpy as jnp
from jax.experimental import pallas as pl
from jax.experimental.pallas import tpu as pltpu


def _pick_tile(n, s):
    """Largest nice N tile that divides N and keeps the 3-NN working set
    (~6 live [S, TILE_N] f32 intermediates) well under the default 32 MiB
    scoped-VMEM limit, so the same tile is safe on v7x (64 MiB physical)."""
    budget = 12 * 1024 * 1024
    for t in (512, 256, 128):
        if n % t == 0 and 6 * max(s, 1) * t * 4 <= budget:
            return t
    return n  # small / odd N: single tile along N


# ---------------- kernel 1: 3-NN interpolation + first 1x1 conv -------------- #
def _interp_conv_kernel(s_is_one, has_points1, *refs):
    i = 0
    xyz1_ref = refs[i]; i += 1          # [1, Cc, TN]
    xyz2_ref = refs[i]; i += 1          # [1, S, Cc]
    if has_points1:
        pts1_ref = refs[i]; i += 1      # [1, D1, TN]
    pts2_ref = refs[i]; i += 1          # [1, D2, S]
    if has_points1:
        w1_ref = refs[i]; i += 1        # [O0, D1]
    w2_ref = refs[i]; i += 1            # [O0, D2]
    b_ref = refs[i]; i += 1             # [O0, 1]
    y_ref = refs[i]; i += 1             # [1, O0, TN]
    ps_ref = refs[i]; i += 1            # [1, 1, O0, 2]

    tn = y_ref.shape[-1]
    pts2 = pts2_ref[0].astype(jnp.float32)                           # [D2, S]

    if s_is_one:
        # points2.repeat(1, N, 1)
        interp = jnp.broadcast_to(pts2, (pts2.shape[0], tn))          # [D2, TN]
    else:
        x1 = xyz1_ref[0].astype(jnp.float32)                          # [Cc, TN]
        x2t = xyz2_ref[0].astype(jnp.float32)                         # [S, Cc]
        S = x2t.shape[0]

        # Squared pairwise distances on the VPU (no depth-3 MXU contraction):
        #   d[s, n] = sum_c (x2[s, c] - x1[c, n])^2   (>= 0 by construction)
        d = jnp.zeros((S, tn), jnp.float32)
        for c in range(x1.shape[0]):
            diff = x2t[:, c:c + 1] - x1[c:c + 1, :]
            d = d + diff * diff

        # Fused min+argmin: pack the source index s into the low mantissa bits
        # of the non-negative f32 distance; one int32 min over S gives both.
        kbits = max(1, math.ceil(math.log2(S)))
        low_mask = (1 << kbits) - 1
        hi_mask = jnp.int32(~low_mask)
        iota_s = jax.lax.broadcasted_iota(jnp.int32, (S, tn), 0)
        key = jnp.bitwise_or(
            jnp.bitwise_and(pltpu.bitcast(d, jnp.int32), hi_mask), iota_s)
        big = jnp.iinfo(jnp.int32).max

        # 3-NN inverse-distance weights, accumulated incrementally.
        wall = jnp.zeros((S, tn), jnp.float32)      # unnormalized weight matrix
        norm = jnp.zeros((1, tn), jnp.float32)
        for _ in range(3):                          # NOTE: assumes S >= 3
            kmin = jnp.min(key, axis=0, keepdims=True)                # [1, TN]
            amin = jnp.bitwise_and(kmin, low_mask)                    # argmin
            dmin = pltpu.bitcast(jnp.bitwise_and(kmin, hi_mask), jnp.float32)
            recip = 1.0 / (dmin + 1e-8)
            onehot = iota_s == amin                                   # bool [S, TN]
            wall = wall + jnp.where(onehot, recip, 0.0)
            norm = norm + recip
            key = jnp.where(onehot, big, key)                         # mask picked

        # interpolation = one MXU matmul; fold 1/norm afterwards (D2 rows only).
        interp = jnp.dot(pts2, wall, preferred_element_type=jnp.float32)
        interp = interp * (1.0 / norm)                                # [D2, TN]

    # First 1x1 conv, weight pre-split so concat([points1, interp]) is never built.
    acc = jnp.dot(w2_ref[...].astype(jnp.float32), interp,
                  preferred_element_type=jnp.float32)                 # [O0, TN]
    if has_points1:
        acc = acc + jnp.dot(w1_ref[...].astype(jnp.float32),
                            pts1_ref[0].astype(jnp.float32),
                            preferred_element_type=jnp.float32)
    y = acc + b_ref[...].astype(jnp.float32)
    y_ref[0] = y.astype(y_ref.dtype)

    # Per-tile BatchNorm partial statistics (per-channel sum / sumsq).
    ps_ref[...] = jnp.concatenate(
        [jnp.sum(y, axis=1, keepdims=True),
         jnp.sum(y * y, axis=1, keepdims=True)], axis=1)[None, None]


# -------- kernel 2: BN(prev)+ReLU fused with the next 1x1 conv --------------- #
def _bn_relu_conv_kernel(y_ref, scale_ref, shift_ref, w_ref, b_ref, o_ref, ps_ref):
    x = jnp.maximum(
        y_ref[0].astype(jnp.float32) * scale_ref[...] + shift_ref[...], 0.0)
    z = jnp.dot(w_ref[...].astype(jnp.float32), x,
                preferred_element_type=jnp.float32) + b_ref[...].astype(jnp.float32)
    o_ref[0] = z.astype(o_ref.dtype)
    ps_ref[...] = jnp.concatenate(
        [jnp.sum(z, axis=1, keepdims=True),
         jnp.sum(z * z, axis=1, keepdims=True)], axis=1)[None, None]


# -------- kernel 3: final BN + ReLU ------------------------------------------ #
def _bn_relu_kernel(y_ref, scale_ref, shift_ref, o_ref):
    o_ref[0] = jnp.maximum(
        y_ref[0].astype(jnp.float32) * scale_ref[...] + shift_ref[...], 0.0
    ).astype(o_ref.dtype)


# ------------------------------- wrapper -------------------------------------- #
def pointnet_feature_propagation(xyz1, xyz2, points1, points2, params):
    """xyz1 [B,Cc,N], xyz2 [B,Cc,S], points1 [B,D1,N] or None, points2 [B,D2,S].
    params: list of (W [out,in], b [out], gamma [out], beta [out]).
    Returns [B, C_out, N] (training-mode BatchNorm, like the PyTorch module)."""
    B, cc, N = xyz1.shape
    S = xyz2.shape[2]
    d2 = points2.shape[1]
    has_points1 = points1 is not None
    s_is_one = S == 1

    tn = _pick_tile(N, S)
    nt = N // tn
    cparams = pltpu.CompilerParams(
        dimension_semantics=("parallel", "parallel"))   # (B, N-tiles)

    def bn_fold(pstats, gamma, beta):
        # Tiny host-side reduction of per-tile partial sums -> folded BN affine.
        tot = jnp.sum(pstats, axis=(0, 1))               # [C, 2]
        cnt = jnp.float32(B * N)
        mean = tot[:, 0] / cnt
        var = jnp.maximum(tot[:, 1] / cnt - mean * mean, 0.0)
        scale = gamma * jax.lax.rsqrt(var + 1e-5)
        shift = beta - mean * scale
        return (scale.reshape(-1, 1).astype(jnp.float32),
                shift.reshape(-1, 1).astype(jnp.float32))

    # ---------------- stage 1: interpolation + conv0 ----------------
    W0, b0, g0, be0 = params[0]
    out0 = W0.shape[0]
    xyz2_t = jnp.transpose(xyz2, (0, 2, 1))              # [B, S, Cc] (tiny glue)

    inputs = [xyz1, xyz2_t]
    in_specs = [
        pl.BlockSpec((1, cc, tn), lambda b, t: (b, 0, t)),
        pl.BlockSpec((1, S, cc), lambda b, t: (b, 0, 0)),
    ]
    if has_points1:
        d1 = points1.shape[1]
        inputs += [points1, points2, W0[:, :d1], W0[:, d1:], b0.reshape(-1, 1)]
        in_specs += [
            pl.BlockSpec((1, d1, tn), lambda b, t: (b, 0, t)),
            pl.BlockSpec((1, d2, S), lambda b, t: (b, 0, 0)),
            pl.BlockSpec((out0, d1), lambda b, t: (0, 0)),
            pl.BlockSpec((out0, d2), lambda b, t: (0, 0)),
            pl.BlockSpec((out0, 1), lambda b, t: (0, 0)),
        ]
    else:
        inputs += [points2, W0, b0.reshape(-1, 1)]
        in_specs += [
            pl.BlockSpec((1, d2, S), lambda b, t: (b, 0, 0)),
            pl.BlockSpec((out0, d2), lambda b, t: (0, 0)),
            pl.BlockSpec((out0, 1), lambda b, t: (0, 0)),
        ]

    y, pstats = pl.pallas_call(
        functools.partial(_interp_conv_kernel, s_is_one, has_points1),
        grid=(B, nt),
        in_specs=in_specs,
        out_specs=[
            pl.BlockSpec((1, out0, tn), lambda b, t: (b, 0, t)),
            pl.BlockSpec((1, 1, out0, 2), lambda b, t: (b, t, 0, 0)),
        ],
        out_shape=[
            jax.ShapeDtypeStruct((B, out0, N), jnp.float32),
            jax.ShapeDtypeStruct((B, nt, out0, 2), jnp.float32),
        ],
        compiler_params=cparams,
    )(*inputs)
    scale, shift = bn_fold(pstats, g0, be0)

    # ------- stages 2..L: normalize previous layer, ReLU, next 1x1 conv -------
    for li in range(1, len(params)):
        W, b, g, be = params[li]
        cout, cin = W.shape
        y, pstats = pl.pallas_call(
            _bn_relu_conv_kernel,
            grid=(B, nt),
            in_specs=[
                pl.BlockSpec((1, cin, tn), lambda b_, t: (b_, 0, t)),
                pl.BlockSpec((cin, 1), lambda b_, t: (0, 0)),
                pl.BlockSpec((cin, 1), lambda b_, t: (0, 0)),
                pl.BlockSpec((cout, cin), lambda b_, t: (0, 0)),
                pl.BlockSpec((cout, 1), lambda b_, t: (0, 0)),
            ],
            out_specs=[
                pl.BlockSpec((1, cout, tn), lambda b_, t: (b_, 0, t)),
                pl.BlockSpec((1, 1, cout, 2), lambda b_, t: (b_, t, 0, 0)),
            ],
            out_shape=[
                jax.ShapeDtypeStruct((B, cout, N), jnp.float32),
                jax.ShapeDtypeStruct((B, nt, cout, 2), jnp.float32),
            ],
            compiler_params=cparams,
        )(y, scale, shift, W, b.reshape(-1, 1))
        scale, shift = bn_fold(pstats, g, be)

    # ------------- finalize: last layer's BN + ReLU ---------------------------
    cout = params[-1][0].shape[0]
    out = pl.pallas_call(
        _bn_relu_kernel,
        grid=(B, nt),
        in_specs=[
            pl.BlockSpec((1, cout, tn), lambda b_, t: (b_, 0, t)),
            pl.BlockSpec((cout, 1), lambda b_, t: (0, 0)),
            pl.BlockSpec((cout, 1), lambda b_, t: (0, 0)),
        ],
        out_specs=pl.BlockSpec((1, cout, tn), lambda b_, t: (b_, 0, t)),
        out_shape=jax.ShapeDtypeStruct((B, cout, N), jnp.float32),
        compiler_params=cparams,
    )(y, scale, shift)
    return out  # already [B, C_out, N] — no output transpose


# --------------------------- pure-JAX reference ------------------------------ #
def _reference(xyz1, xyz2, points1, points2, params):
    xyz1 = jnp.transpose(xyz1, (0, 2, 1))
    xyz2 = jnp.transpose(xyz2, (0, 2, 1))
    points2 = jnp.transpose(points2, (0, 2, 1))
    B, N, _ = xyz1.shape
    S = xyz2.shape[1]
    if S == 1:
        interp = jnp.broadcast_to(points2, (B, N, points2.shape[-1]))
    else:
        dists = (jnp.sum(xyz1 ** 2, -1)[:, :, None] + jnp.sum(xyz2 ** 2, -1)[:, None, :]
                 - 2.0 * jnp.einsum('bnc,bsc->bns', xyz1, xyz2))
        idx = jnp.argsort(dists, axis=-1)[:, :, :3]
        d3 = jnp.take_along_axis(dists, idx, axis=-1)
        recip = 1.0 / (d3 + 1e-8)
        w = recip / jnp.sum(recip, -1, keepdims=True)
        gathered = jax.vmap(lambda p, i: p[i])(points2, idx)            # [B, N, 3, D2]
        interp = jnp.sum(gathered * w[..., None], axis=2)
    x = interp
    if points1 is not None:
        x = jnp.concatenate([jnp.transpose(points1, (0, 2, 1)), interp], axis=-1)
    for (W, b, g, be) in params:
        y = jnp.einsum('bnc,oc->bno', x, W) + b
        mean = jnp.mean(y, axis=(0, 1), keepdims=True)
        var = jnp.mean((y - mean) ** 2, axis=(0, 1), keepdims=True)
        y = g * ((y - mean) * jax.lax.rsqrt(var + 1e-5)) + be
        x = jnp.maximum(y, 0.0)
    return jnp.transpose(x, (0, 2, 1))


# ---------------------------------- main ------------------------------------- #
if __name__ == "__main__":
    B, C, N, S = 2, 3, 16, 8
    D1, D2 = 4, 6
    in_channel = D1 + D2
    mlp = [32, 16]

    key = jax.random.PRNGKey(0)
    k = jax.random.split(key, 8)
    xyz1 = jax.random.normal(k[0], (B, C, N), jnp.float32)
    xyz2 = jax.random.normal(k[1], (B, C, S), jnp.float32)
    points1 = jax.random.normal(k[2], (B, D1, N), jnp.float32)
    points2 = jax.random.normal(k[3], (B, D2, S), jnp.float32)

    # deterministic parameter init (Conv1d weight [out,in] with k=1 squeezed; BN gamma/beta)
    params = []
    last = in_channel
    pkey = k[4]
    for out in mlp:
        pkey, kw, kb = jax.random.split(pkey, 3)
        W = jax.random.normal(kw, (out, last), jnp.float32) * 0.1
        b = jax.random.normal(kb, (out,), jnp.float32) * 0.1
        gamma = jnp.ones((out,), jnp.float32)
        beta = jnp.zeros((out,), jnp.float32)
        params.append((W, b, gamma, beta))
        last = out

    y = pointnet_feature_propagation(xyz1, xyz2, points1, points2, params)
    y = jax.block_until_ready(y)

    y_ref = _reference(xyz1, xyz2, points1, points2, params)
    assert y.shape == (B, mlp[-1], N)
    assert jnp.allclose(y, y_ref, rtol=1e-4, atol=1e-4), "mismatch vs reference"

    print("KERNEL_OK")
</pallas_src>

<mosaic_0001>
module attributes {stable_mosaic.version = 11 : i64} {
  func.func @_interp_conv_kernel(%arg0: i32, %arg1: i32, %arg2: memref<1x3x16xf32, #tpu.memory_space<vmem>>, %arg3: memref<1x8x3xf32, #tpu.memory_space<vmem>>, %arg4: memref<1x4x16xf32, #tpu.memory_space<vmem>>, %arg5: memref<1x6x8xf32, #tpu.memory_space<vmem>>, %arg6: memref<32x4xf32, #tpu.memory_space<vmem>>, %arg7: memref<32x6xf32, #tpu.memory_space<vmem>>, %arg8: memref<32x1xf32, #tpu.memory_space<vmem>>, %arg9: memref<1x32x16xf32, #tpu.memory_space<vmem>>, %arg10: memref<1x1x32x2xf32, #tpu.memory_space<vmem>>) attributes {dimension_semantics = [#tpu.dimension_semantics<parallel>, #tpu.dimension_semantics<parallel>], iteration_bounds = array<i64: 2, 1>, scalar_prefetch = 0 : i64, scratch_operands = 0 : i64, tpu.core_type = #tpu.core_type<tc>, window_params = [{transform_indices = @transform_0, window_bounds = array<i64: 1, 3, 16>}, {transform_indices = @transform_1, window_bounds = array<i64: 1, 8, 3>}, {transform_indices = @transform_2, window_bounds = array<i64: 1, 4, 16>}, {transform_indices = @transform_3, window_bounds = array<i64: 1, 6, 8>}, {pipeline_mode = #tpu.pipeline_mode<synchronous>, transform_indices = @transform_4, window_bounds = array<i64: 32, 4>}, {pipeline_mode = #tpu.pipeline_mode<synchronous>, transform_indices = @transform_5, window_bounds = array<i64: 32, 6>}, {pipeline_mode = #tpu.pipeline_mode<synchronous>, transform_indices = @transform_6, window_bounds = array<i64: 32, 1>}, {transform_indices = @transform_7, window_bounds = array<i64: 1, 32, 16>}, {transform_indices = @transform_8, window_bounds = array<i64: 1, 1, 32, 2>}]} {
    %c0 = arith.constant 0 : index
    %c0_0 = arith.constant 0 : index
    %c0_1 = arith.constant 0 : index
    %0 = vector.load %arg5[%c0, %c0_0, %c0_1] : memref<1x6x8xf32, #tpu.memory_space<vmem>>, vector<1x6x8xf32>
    %1 = vector.shape_cast %0 : vector<1x6x8xf32> to vector<6x8xf32>
    %c0_2 = arith.constant 0 : index
    %c0_3 = arith.constant 0 : index
    %c0_4 = arith.constant 0 : index
    %2 = vector.load %arg2[%c0_2, %c0_3, %c0_4] : memref<1x3x16xf32, #tpu.memory_space<vmem>>, vector<1x3x16xf32>
    %3 = vector.shape_cast %2 : vector<1x3x16xf32> to vector<3x16xf32>
    %c0_5 = arith.constant 0 : index
    %c0_6 = arith.constant 0 : index
    %c0_7 = arith.constant 0 : index
    %4 = vector.load %arg3[%c0_5, %c0_6, %c0_7] : memref<1x8x3xf32, #tpu.memory_space<vmem>>, vector<1x8x3xf32>
    %5 = vector.shape_cast %4 : vector<1x8x3xf32> to vector<8x3xf32>
    %cst = arith.constant 0.000000e+00 : f32
    %6 = vector.broadcast %cst : f32 to vector<8x16xf32>
    %7 = vector.extract_strided_slice %5 {offsets = [0, 0], sizes = [8, 1], strides = [1, 1]} : vector<8x3xf32> to vector<8x1xf32>
    %8 = vector.extract_strided_slice %3 {offsets = [0, 0], sizes = [1, 16], strides = [1, 1]} : vector<3x16xf32> to vector<1x16xf32>
    %9 = vector.broadcast %7 : vector<8x1xf32> to vector<8x16xf32>
    %10 = vector.broadcast %8 : vector<1x16xf32> to vector<8x16xf32>
    %11 = arith.subf %9, %10 : vector<8x16xf32>
    %12 = arith.mulf %11, %11 : vector<8x16xf32>
    %13 = arith.addf %6, %12 : vector<8x16xf32>
    %14 = vector.extract_strided_slice %5 {offsets = [0, 1], sizes = [8, 1], strides = [1, 1]} : vector<8x3xf32> to vector<8x1xf32>
    %15 = vector.extract_strided_slice %3 {offsets = [1, 0], sizes = [1, 16], strides = [1, 1]} : vector<3x16xf32> to vector<1x16xf32>
    %16 = vector.broadcast %14 : vector<8x1xf32> to vector<8x16xf32>
    %17 = vector.broadcast %15 : vector<1x16xf32> to vector<8x16xf32>
    %18 = arith.subf %16, %17 : vector<8x16xf32>
    %19 = arith.mulf %18, %18 : vector<8x16xf32>
    %20 = arith.addf %13, %19 : vector<8x16xf32>
    %21 = vector.extract_strided_slice %5 {offsets = [0, 2], sizes = [8, 1], strides = [1, 1]} : vector<8x3xf32> to vector<8x1xf32>
    %22 = vector.extract_strided_slice %3 {offsets = [2, 0], sizes = [1, 16], strides = [1, 1]} : vector<3x16xf32> to vector<1x16xf32>
    %23 = vector.broadcast %21 : vector<8x1xf32> to vector<8x16xf32>
    %24 = vector.broadcast %22 : vector<1x16xf32> to vector<8x16xf32>
    %25 = arith.subf %23, %24 : vector<8x16xf32>
    %26 = arith.mulf %25, %25 : vector<8x16xf32>
    %27 = arith.addf %20, %26 : vector<8x16xf32>
    %28 = tpu.iota {dimensions = array<i32: 0>} : vector<8x16xi32>
    %29 = tpu.bitcast %27 : vector<8x16xf32> -> vector<8x16xi32>
    %c-8_i32 = arith.constant -8 : i32
    %30 = vector.broadcast %c-8_i32 : i32 to vector<8x16xi32>
    %31 = arith.andi %29, %30 : vector<8x16xi32>
    %32 = arith.ori %31, %28 : vector<8x16xi32>
    %cst_8 = arith.constant 0.000000e+00 : f32
    %33 = vector.broadcast %cst_8 : f32 to vector<8x16xf32>
    %cst_9 = arith.constant 0.000000e+00 : f32
    %34 = vector.broadcast %cst_9 : f32 to vector<1x16xf32>
    %cst_10 = arith.constant dense<2147483647> : vector<16xi32>
    %35 = vector.multi_reduction <minsi>, %32, %cst_10 [0] : vector<8x16xi32> to vector<16xi32>
    %36 = vector.shape_cast %35 : vector<16xi32> to vector<1x16xi32>
    %c7_i32 = arith.constant 7 : i32
    %37 = vector.broadcast %c7_i32 : i32 to vector<1x16xi32>
    %38 = arith.andi %36, %37 : vector<1x16xi32>
    %c-8_i32_11 = arith.constant -8 : i32
    %39 = vector.broadcast %c-8_i32_11 : i32 to vector<1x16xi32>
    %40 = arith.andi %36, %39 : vector<1x16xi32>
    %41 = tpu.bitcast %40 : vector<1x16xi32> -> vector<1x16xf32>
    %cst_12 = arith.constant 9.99999993E-9 : f32
    %42 = vector.broadcast %cst_12 : f32 to vector<1x16xf32>
    %43 = arith.addf %41, %42 : vector<1x16xf32>
    %cst_13 = arith.constant 1.000000e+00 : f32
    %44 = vector.broadcast %cst_13 : f32 to vector<1x16xf32>
    %45 = arith.divf %44, %43 : vector<1x16xf32>
    %46 = vector.broadcast %38 : vector<1x16xi32> to vector<8x16xi32>
    %47 = arith.cmpi eq, %28, %46 : vector<8x16xi32>
    %cst_14 = arith.constant 0.000000e+00 : f32
    %48 = vector.shape_cast %45 : vector<1x16xf32> to vector<1x16xf32>
    %49 = vector.broadcast %48 : vector<1x16xf32> to vector<8x16xf32>
    %50 = vector.broadcast %cst_14 : f32 to vector<8x16xf32>
    %51 = arith.select %47, %49, %50 : vector<8x16xi1>, vector<8x16xf32>
    %52 = arith.addf %33, %51 : vector<8x16xf32>
    %53 = arith.addf %34, %45 : vector<1x16xf32>
    %c2147483647_i32 = arith.constant 2147483647 : i32
    %54 = vector.broadcast %c2147483647_i32 : i32 to vector<8x16xi32>
    %55 = arith.select %47, %54, %32 : vector<8x16xi1>, vector<8x16xi32>
    %cst_15 = arith.constant dense<2147483647> : vector<16xi32>
    %56 = vector.multi_reduction <minsi>, %55, %cst_15 [0] : vector<8x16xi32> to vector<16xi32>
    %57 = vector.shape_cast %56 : vector<16xi32> to vector<1x16xi32>
    %c7_i32_16 = arith.constant 7 : i32
    %58 = vector.broadcast %c7_i32_16 : i32 to vector<1x16xi32>
    %59 = arith.andi %57, %58 : vector<1x16xi32>
    %c-8_i32_17 = arith.constant -8 : i32
    %60 = vector.broadcast %c-8_i32_17 : i32 to vector<1x16xi32>
    %61 = arith.andi %57, %60 : vector<1x16xi32>
    %62 = tpu.bitcast %61 : vector<1x16xi32> -> vector<1x16xf32>
    %cst_18 = arith.constant 9.99999993E-9 : f32
    %63 = vector.broadcast %cst_18 : f32 to vector<1x16xf32>
    %64 = arith.addf %62, %63 : vector<1x16xf32>
    %cst_19 = arith.constant 1.000000e+00 : f32
    %65 = vector.broadcast %cst_19 : f32 to vector<1x16xf32>
    %66 = arith.divf %65, %64 : vector<1x16xf32>
    %67 = vector.broadcast %59 : vector<1x16xi32> to vector<8x16xi32>
    %68 = arith.cmpi eq, %28, %67 : vector<8x16xi32>
    %cst_20 = arith.constant 0.000000e+00 : f32
    %69 = vector.shape_cast %66 : vector<1x16xf32> to vector<1x16xf32>
    %70 = vector.broadcast %69 : vector<1x16xf32> to vector<8x16xf32>
    %71 = vector.broadcast %cst_20 : f32 to vector<8x16xf32>
    %72 = arith.select %68, %70, %71 : vector<8x16xi1>, vector<8x16xf32>
    %73 = arith.addf %52, %72 : vector<8x16xf32>
    %74 = arith.addf %53, %66 : vector<1x16xf32>
    %c2147483647_i32_21 = arith.constant 2147483647 : i32
    %75 = vector.broadcast %c2147483647_i32_21 : i32 to vector<8x16xi32>
    %76 = arith.select %68, %75, %55 : vector<8x16xi1>, vector<8x16xi32>
    %cst_22 = arith.constant dense<2147483647> : vector<16xi32>
    %77 = vector.multi_reduction <minsi>, %76, %cst_22 [0] : vector<8x16xi32> to vector<16xi32>
    %78 = vector.shape_cast %77 : vector<16xi32> to vector<1x16xi32>
    %c7_i32_23 = arith.constant 7 : i32
    %79 = vector.broadcast %c7_i32_23 : i32 to vector<1x16xi32>
    %80 = arith.andi %78, %79 : vector<1x16xi32>
    %c-8_i32_24 = arith.constant -8 : i32
    %81 = vector.broadcast %c-8_i32_24 : i32 to vector<1x16xi32>
    %82 = arith.andi %78, %81 : vector<1x16xi32>
    %83 = tpu.bitcast %82 : vector<1x16xi32> -> vector<1x16xf32>
    %cst_25 = arith.constant 9.99999993E-9 : f32
    %84 = vector.broadcast %cst_25 : f32 to vector<1x16xf32>
    %85 = arith.addf %83, %84 : vector<1x16xf32>
    %cst_26 = arith.constant 1.000000e+00 : f32
    %86 = vector.broadcast %cst_26 : f32 to vector<1x16xf32>
    %87 = arith.divf %86, %85 : vector<1x16xf32>
    %88 = vector.broadcast %80 : vector<1x16xi32> to vector<8x16xi32>
    %89 = arith.cmpi eq, %28, %88 : vector<8x16xi32>
    %cst_27 = arith.constant 0.000000e+00 : f32
    %90 = vector.shape_cast %87 : vector<1x16xf32> to vector<1x16xf32>
    %91 = vector.broadcast %90 : vector<1x16xf32> to vector<8x16xf32>
    %92 = vector.broadcast %cst_27 : f32 to vector<8x16xf32>
    %93 = arith.select %89, %91, %92 : vector<8x16xi1>, vector<8x16xf32>
    %94 = arith.addf %73, %93 : vector<8x16xf32>
    %95 = arith.addf %74, %87 : vector<1x16xf32>
    %cst_28 = arith.constant dense<0.000000e+00> : vector<6x16xf32>
    %96 = tpu.matmul %1, %94, %cst_28 {dimension_numbers = #tpu.dot_dimension_numbers<[1], [0], [0], [1], [0, 0, 1, 1], [], []>} : vector<6x8xf32>, vector<8x16xf32>, vector<6x16xf32> -> vector<6x16xf32>
    %cst_29 = arith.constant 1.000000e+00 : f32
    %97 = vector.broadcast %cst_29 : f32 to vector<1x16xf32>
    %98 = arith.divf %97, %95 : vector<1x16xf32>
    %99 = vector.broadcast %98 : vector<1x16xf32> to vector<6x16xf32>
    %100 = arith.mulf %96, %99 : vector<6x16xf32>
    %c0_30 = arith.constant 0 : index
    %c0_31 = arith.constant 0 : index
    %101 = vector.load %arg7[%c0_30, %c0_31] : memref<32x6xf32, #tpu.memory_space<vmem>>, vector<32x6xf32>
    %cst_32 = arith.constant dense<0.000000e+00> : vector<32x16xf32>
    %102 = tpu.matmul %101, %100, %cst_32 {dimension_numbers = #tpu.dot_dimension_numbers<[1], [0], [0], [1], [0, 0, 1, 1], [], []>} : vector<32x6xf32>, vector<6x16xf32>, vector<32x16xf32> -> vector<32x16xf32>
    %c0_33 = arith.constant 0 : index
    %c0_34 = arith.constant 0 : index
    %103 = vector.load %arg6[%c0_33, %c0_34] : memref<32x4xf32, #tpu.memory_space<vmem>>, vector<32x4xf32>
    %c0_35 = arith.constant 0 : index
    %c0_36 = arith.constant 0 : index
    %c0_37 = arith.constant 0 : index
    %104 = vector.load %arg4[%c0_35, %c0_36, %c0_37] : memref<1x4x16xf32, #tpu.memory_space<vmem>>, vector<1x4x16xf32>
    %105 = vector.shape_cast %104 : vector<1x4x16xf32> to vector<4x16xf32>
    %cst_38 = arith.constant dense<0.000000e+00> : vector<32x16xf32>
    %106 = tpu.matmul %103, %105, %cst_38 {dimension_numbers = #tpu.dot_dimension_numbers<[1], [0], [0], [1], [0, 0, 1, 1], [], []>} : vector<32x4xf32>, vector<4x16xf32>, vector<32x16xf32> -> vector<32x16xf32>
    %107 = arith.addf %102, %106 : vector<32x16xf32>
    %c0_39 = arith.constant 0 : index
    %c0_40 = arith.constant 0 : index
    %108 = vector.load %arg8[%c0_39, %c0_40] : memref<32x1xf32, #tpu.memory_space<vmem>>, vector<32x1xf32>
    %109 = vector.broadcast %108 : vector<32x1xf32> to vector<32x16xf32>
    %110 = arith.addf %107, %109 : vector<32x16xf32>
    %c0_41 = arith.constant 0 : index
    %c0_42 = arith.constant 0 : index
    %c0_43 = arith.constant 0 : index
    %111 = vector.load %arg9[%c0_41, %c0_42, %c0_43] : memref<1x32x16xf32, #tpu.memory_space<vmem>>, vector<1x32x16xf32>
    %112 = vector.shape_cast %111 : vector<1x32x16xf32> to vector<32x16xf32>
    %113 = vector.shape_cast %110 : vector<32x16xf32> to vector<1x32x16xf32>
    tpu.vector_store %arg9[%c0_41, %c0_42, %c0_43], %113 {strides = array<i32>} : memref<1x32x16xf32, #tpu.memory_space<vmem>>, vector<1x32x16xf32>,
    %cst_44 = arith.constant dense<0.000000e+00> : vector<32xf32>
    %114 = vector.multi_reduction <add>, %110, %cst_44 [1] : vector<32x16xf32> to vector<32xf32>
    %115 = vector.shape_cast %114 : vector<32xf32> to vector<32x1xf32>
    %116 = arith.mulf %110, %110 : vector<32x16xf32>
    %cst_45 = arith.constant dense<0.000000e+00> : vector<32xf32>
    %117 = vector.multi_reduction <add>, %116, %cst_45 [1] : vector<32x16xf32> to vector<32xf32>
    %118 = vector.shape_cast %117 : vector<32xf32> to vector<32x1xf32>
    %119 = tpu.concatenate %115, %118 in 1 : vector<32x1xf32>, vector<32x1xf32> -> vector<32x2xf32>
    %120 = vector.shape_cast %119 : vector<32x2xf32> to vector<1x1x32x2xf32>
    %c0_46 = arith.constant 0 : index
    %c0_47 = arith.constant 0 : index
    %c0_48 = arith.constant 0 : index
    %c0_49 = arith.constant 0 : index
    %121 = vector.load %arg10[%c0_46, %c0_47, %c0_48, %c0_49] : memref<1x1x32x2xf32, #tpu.memory_space<vmem>>, vector<1x1x32x2xf32>
    tpu.vector_store %arg10[%c0_46, %c0_47, %c0_48, %c0_49], %120 {strides = array<i32>} : memref<1x1x32x2xf32, #tpu.memory_space<vmem>>, vector<1x1x32x2xf32>,
    return
  }
  func.func @transform_0(%arg0: i32, %arg1: i32) -> (i32, i32, i32) {
    %c0_i32 = arith.constant 0 : i32
    %c0_i32_0 = arith.constant 0 : i32
    return %arg0, %c0_i32, %arg1 : i32, i32, i32
  }
  func.func @transform_1(%arg0: i32, %arg1: i32) -> (i32, i32, i32) {
    %c0_i32 = arith.constant 0 : i32
    %c0_i32_0 = arith.constant 0 : i32
    %c0_i32_1 = arith.constant 0 : i32
    return %arg0, %c0_i32, %c0_i32_0 : i32, i32, i32
  }
  func.func @transform_2(%arg0: i32, %arg1: i32) -> (i32, i32, i32) {
    %c0_i32 = arith.constant 0 : i32
    %c0_i32_0 = arith.constant 0 : i32
    return %arg0, %c0_i32, %arg1 : i32, i32, i32
  }
  func.func @transform_3(%arg0: i32, %arg1: i32) -> (i32, i32, i32) {
    %c0_i32 = arith.constant 0 : i32
    %c0_i32_0 = arith.constant 0 : i32
    %c0_i32_1 = arith.constant 0 : i32
    return %arg0, %c0_i32, %c0_i32_0 : i32, i32, i32
  }
  func.func @transform_4(%arg0: i32, %arg1: i32) -> (i32, i32) {
    %c0_i32 = arith.constant 0 : i32
    %c0_i32_0 = arith.constant 0 : i32
    %c0_i32_1 = arith.constant 0 : i32
    return %c0_i32, %c0_i32_0 : i32, i32
  }
  func.func @transform_5(%arg0: i32, %arg1: i32) -> (i32, i32) {
    %c0_i32 = arith.constant 0 : i32
    %c0_i32_0 = arith.constant 0 : i32
    %c0_i32_1 = arith.constant 0 : i32
    return %c0_i32, %c0_i32_0 : i32, i32
  }
  func.func @transform_6(%arg0: i32, %arg1: i32) -> (i32, i32) {
    %c0_i32 = arith.constant 0 : i32
    %c0_i32_0 = arith.constant 0 : i32
    %c0_i32_1 = arith.constant 0 : i32
    return %c0_i32, %c0_i32_0 : i32, i32
  }
  func.func @transform_7(%arg0: i32, %arg1: i32) -> (i32, i32, i32) {
    %c0_i32 = arith.constant 0 : i32
    %c0_i32_0 = arith.constant 0 : i32
    return %arg0, %c0_i32, %arg1 : i32, i32, i32
  }
  func.func @transform_8(%arg0: i32, %arg1: i32) -> (i32, i32, i32, i32) {
    %c0_i32 = arith.constant 0 : i32
    %c0_i32_0 = arith.constant 0 : i32
    %c0_i32_1 = arith.constant 0 : i32
    return %arg0, %arg1, %c0_i32, %c0_i32_0 : i32, i32, i32, i32
  }
}

</mosaic_0001>

<llo_original>
// kernel: tpu_custom_call.1
$region0: #{tpu_custom_call.1}
  #allocation0 [shape = 'u32[]', space=smem, size = 0x4, offset = 0x4, fixed_abs, tag = 'smem constant byte address 0x4 - core index']
  #allocation1 [shape = 'u32[144,128]{1,0:T(1,128)}', space=vmem, size = 0x12000, scoped, tag = 'internal scratch']
  %s0 = inlined_call_operand.vmem [shape: f32[2,3,16], index: 0, kind: input, shape index: {}]
  %s1 = inlined_call_operand.vmem [shape: f32[2,8,3], index: 1, kind: input, shape index: {}]
  %s2 = inlined_call_operand.vmem [shape: f32[2,4,16], index: 2, kind: input, shape index: {}]
  %s3 = inlined_call_operand.vmem [shape: f32[2,6,8], index: 3, kind: input, shape index: {}]
  %s4 = inlined_call_operand.vmem [shape: f32[32,4], index: 4, kind: input, shape index: {}]
  %s5 = inlined_call_operand.vmem [shape: f32[32,6], index: 5, kind: input, shape index: {}]
  %s6 = inlined_call_operand.vmem [shape: f32[32,1], index: 6, kind: input, shape index: {}]
  %s7 = inlined_call_operand.vmem [shape: f32[2,32,16], index: 7, kind: output, shape index: {0}]
  %s8 = inlined_call_operand.vmem [shape: f32[2,1,32,2], index: 8, kind: output, shape index: {1}]
  %9 = xla_tuple %s7, %s8
  %s10 = sld [smem:[#allocation0]]
  $region69: #{tpu_custom_call.1} parent=0
    _
  %s12 = ssub.s32 1, %s10
  %s13 = scalar_select 0, %s12, %s10
  loop: start=0, step=1, limit=4
  $region2: #{tpu_custom_call.1} parent=0 // loop_pre_header
    _
  $region3: #{tpu_custom_call.1} parent=0 // loop_header
    %s15 = sphi 0, %s19
    %p16 = scmp.ge.s32.totalorder %s15, 4
    %s22 = sphi 0, %s34
    %s23 = sphi 0, %s30
    %s24 = sphi 0, %s22
    %s25 = sphi 0, %s23
    %s26 = sphi 0, %s24
    %s27 = sphi 0, %s25
    %s39 = sphi 0, %s41
    %s42 = sphi 0, %s39
    %s43 = sphi 0, %s42
    %s59 = sphi 0, %s43
    %s65 = sphi 0, %s67
    %s68 = sphi 0, %s65
    %s69 = sphi 0, %s68
    %s85 = sphi 0, %s69
    %s93 = sphi 0, %s95
    %s96 = sphi 0, %s93
    %s97 = sphi 0, %s96
    %s113 = sphi 0, %s97
    %s119 = sphi 0, %s121
    %s122 = sphi 0, %s119
    %s123 = sphi 0, %s122
    %s139 = sphi 0, %s123
    %s143 = sphi 0, %s143
    %s145 = sphi 0, %s143
    %s146 = sphi 0, %s145
    %s160 = sphi 0, %s146
    %s164 = sphi 0, %s164
    %s166 = sphi 0, %s164
    %s167 = sphi 0, %s166
    %s181 = sphi 0, %s167
    %s185 = sphi 0, %s185
    %s187 = sphi 0, %s185
    %s188 = sphi 0, %s187
    %s202 = sphi 0, %s188
    %s210 = sphi 0, %s212
    %s213 = sphi 0, %s210
    %s214 = sphi 0, %s213
    %s230 = sphi 0, %s214
    %s238 = sphi 0, %s240
    %s241 = sphi 0, %s238
    %s242 = sphi 0, %s241
    %s258 = sphi 0, %s242
  $region4: #{tpu_custom_call.1} parent=0 // loop_header_branch
    %18 = sbr.rel (%p16) target = $region8
  $region5: #{tpu_custom_call.1} parent=0 // loop_body
    %s20 = ssub.s32 %s15, 1
    %s21 = ssub.s32 %s15, 2
    %s28 = sadd.s32 1, %s23
    %p29 = scmp.ge.s32.totalorder %s28, 1
    %s30 = scalar_select %p29, 0, %s28
    %s31 = sadd.s32 1, %s22
    %s32 = scalar_select %p29, %s31, %s22
    %p33 = scmp.ge.s32.totalorder %s32, 2
    %s34 = scalar_select %p33, 0, %s32
    %s35 = ssub.s32 %s22, %s34
    %s36 = ssub.s32 %s23, %s30
    %s37 = sor.u32 %s35, %s36
    %p38 = scmp.eq.s32.totalorder %s37, 0
    %s40 = sadd.s32 %s39, 1
    %s41 = scalar_select %p38, %s39, %s40
    %p44 = pneg %p38
    %p45 = scmp.eq.s32.totalorder %s15, 1
    %p46 = por %p44, %p45
    %p47 = scmp.ne.s32.totalorder %s39, %s42
    %p48 = scmp.eq.s32.totalorder %s15, 0
    %p49 = por %p47, %p48
    %p50 = scmp.ne.s32.totalorder %s39, %s42
    %p51 = scmp.eq.s32.totalorder %s20, 1
    %p52 = por %p50, %p51
    %p53 = scmp.ne.s32.totalorder %s42, %s43
    %p54 = scmp.eq.s32.totalorder %s20, 0
    %p55 = por %p53, %p54
    %p56 = scmp.ne.s32.totalorder %s42, %s43
    %p57 = scmp.eq.s32.totalorder %s21, 1
    %p58 = por %p56, %p57
    %p60 = scmp.ne.s32.totalorder %s43, %s59
    %p61 = scmp.eq.s32.totalorder %s21, 0
    %p62 = por %p60, %p61
    %s63 = ssub.s32 %s22, %s34
    %p64 = scmp.eq.s32.totalorder %s63, 0
    %s66 = sadd.s32 %s65, 1
    %s67 = scalar_select %p64, %s65, %s66
    %p70 = pneg %p64
    %p71 = scmp.eq.s32.totalorder %s15, 1
    %p72 = por %p70, %p71
    %p73 = scmp.ne.s32.totalorder %s65, %s68
    %p74 = scmp.eq.s32.totalorder %s15, 0
    %p75 = por %p73, %p74
    %p76 = scmp.ne.s32.totalorder %s65, %s68
    %p77 = scmp.eq.s32.totalorder %s20, 1
    %p78 = por %p76, %p77
    %p79 = scmp.ne.s32.totalorder %s68, %s69
    %p80 = scmp.eq.s32.totalorder %s20, 0
    %p81 = por %p79, %p80
    %p82 = scmp.ne.s32.totalorder %s68, %s69
    %p83 = scmp.eq.s32.totalorder %s21, 1
    %p84 = por %p82, %p83
    %p86 = scmp.ne.s32.totalorder %s69, %s85
    %p87 = scmp.eq.s32.totalorder %s21, 0
    %p88 = por %p86, %p87
    %s89 = ssub.s32 %s22, %s34
    %s90 = ssub.s32 %s23, %s30
    %s91 = sor.u32 %s89, %s90
    %p92 = scmp.eq.s32.totalorder %s91, 0
    %s94 = sadd.s32 %s93, 1
    %s95 = scalar_select %p92, %s93, %s94
    %p98 = pneg %p92
    %p99 = scmp.eq.s32.totalorder %s15, 1
    %p100 = por %p98, %p99
    %p101 = scmp.ne.s32.totalorder %s93, %s96
    %p102 = scmp.eq.s32.totalorder %s15, 0
    %p103 = por %p101, %p102
    %p104 = scmp.ne.s32.totalorder %s93, %s96
    %p105 = scmp.eq.s32.totalorder %s20, 1
    %p106 = por %p104, %p105
    %p107 = scmp.ne.s32.totalorder %s96, %s97
    %p108 = scmp.eq.s32.totalorder %s20, 0
    %p109 = por %p107, %p108
    %p110 = scmp.ne.s32.totalorder %s96, %s97
    %p111 = scmp.eq.s32.totalorder %s21, 1
    %p112 = por %p110, %p111
    %p114 = scmp.ne.s32.totalorder %s97, %s113
    %p115 = scmp.eq.s32.totalorder %s21, 0
    %p116 = por %p114, %p115
    %s117 = ssub.s32 %s22, %s34
    %p118 = scmp.eq.s32.totalorder %s117, 0
    %s120 = sadd.s32 %s119, 1
    %s121 = scalar_select %p118, %s119, %s120
    %p124 = pneg %p118
    %p125 = scmp.eq.s32.totalorder %s15, 1
    %p126 = por %p124, %p125
    %p127 = scmp.ne.s32.totalorder %s119, %s122
    %p128 = scmp.eq.s32.totalorder %s15, 0
    %p129 = por %p127, %p128
    %p130 = scmp.ne.s32.totalorder %s119, %s122
    %p131 = scmp.eq.s32.totalorder %s20, 1
    %p132 = por %p130, %p131
    %p133 = scmp.ne.s32.totalorder %s122, %s123
    %p134 = scmp.eq.s32.totalorder %s20, 0
    %p135 = por %p133, %p134
    %p136 = scmp.ne.s32.totalorder %s122, %s123
    %p137 = scmp.eq.s32.totalorder %s21, 1
    %p138 = por %p136, %p137
    %p140 = scmp.ne.s32.totalorder %s123, %s139
    %p141 = scmp.eq.s32.totalorder %s21, 0
    %p142 = por %p140, %p141
    %s144 = sadd.s32 %s143, 1
    %p147 = scmp.eq.s32.totalorder %s15, 1
    %p148 = scmp.ne.s32.totalorder %s143, %s145
    %p149 = scmp.eq.s32.totalorder %s15, 0
    %p150 = por %p148, %p149
    %p151 = scmp.ne.s32.totalorder %s143, %s145
    %p152 = scmp.eq.s32.totalorder %s20, 1
    %p153 = por %p151, %p152
    %p154 = scmp.ne.s32.totalorder %s145, %s146
    %p155 = scmp.eq.s32.totalorder %s20, 0
    %p156 = por %p154, %p155
    %p157 = scmp.ne.s32.totalorder %s145, %s146
    %p158 = scmp.eq.s32.totalorder %s21, 1
    %p159 = por %p157, %p158
    %p161 = scmp.ne.s32.totalorder %s146, %s160
    %p162 = scmp.eq.s32.totalorder %s21, 0
    %p163 = por %p161, %p162
    %s165 = sadd.s32 %s164, 1
    %p168 = scmp.eq.s32.totalorder %s15, 1
    %p169 = scmp.ne.s32.totalorder %s164, %s166
    %p170 = scmp.eq.s32.totalorder %s15, 0
    %p171 = por %p169, %p170
    %p172 = scmp.ne.s32.totalorder %s164, %s166
    %p173 = scmp.eq.s32.totalorder %s20, 1
    %p174 = por %p172, %p173
    %p175 = scmp.ne.s32.totalorder %s166, %s167
    %p176 = scmp.eq.s32.totalorder %s20, 0
    %p177 = por %p175, %p176
    %p178 = scmp.ne.s32.totalorder %s166, %s167
    %p179 = scmp.eq.s32.totalorder %s21, 1
    %p180 = por %p178, %p179
    %p182 = scmp.ne.s32.totalorder %s167, %s181
    %p183 = scmp.eq.s32.totalorder %s21, 0
    %p184 = por %p182, %p183
    %s186 = sadd.s32 %s185, 1
    %p189 = scmp.eq.s32.totalorder %s15, 1
    %p190 = scmp.ne.s32.totalorder %s185, %s187
    %p191 = scmp.eq.s32.totalorder %s15, 0
    %p192 = por %p190, %p191
    %p193 = scmp.ne.s32.totalorder %s185, %s187
    %p194 = scmp.eq.s32.totalorder %s20, 1
    %p195 = por %p193, %p194
    %p196 = scmp.ne.s32.totalorder %s187, %s188
    %p197 = scmp.eq.s32.totalorder %s20, 0
    %p198 = por %p196, %p197
    %p199 = scmp.ne.s32.totalorder %s187, %s188
    %p200 = scmp.eq.s32.totalorder %s21, 1
    %p201 = por %p199, %p200
    %p203 = scmp.ne.s32.totalorder %s188, %s202
    %p204 = scmp.eq.s32.totalorder %s21, 0
    %p205 = por %p203, %p204
    %s206 = ssub.s32 %s22, %s34
    %s207 = ssub.s32 %s23, %s30
    %s208 = sor.u32 %s206, %s207
    %p209 = scmp.eq.s32.totalorder %s208, 0
    %s211 = sadd.s32 %s210, 1
    %s212 = scalar_select %p209, %s210, %s211
    %p215 = pneg %p209
    %p216 = scmp.eq.s32.totalorder %s15, 1
    %p217 = por %p215, %p216
    %p218 = scmp.ne.s32.totalorder %s210, %s213
    %p219 = scmp.eq.s32.totalorder %s15, 0
    %p220 = por %p218, %p219
    %p221 = scmp.ne.s32.totalorder %s210, %s213
    %p222 = scmp.eq.s32.totalorder %s20, 1
    %p223 = por %p221, %p222
    %p224 = scmp.ne.s32.totalorder %s213, %s214
    %p225 = scmp.eq.s32.totalorder %s20, 0
    %p226 = por %p224, %p225
    %p227 = scmp.ne.s32.totalorder %s213, %s214
    %p228 = scmp.eq.s32.totalorder %s21, 1
    %p229 = por %p227, %p228
    %p231 = scmp.ne.s32.totalorder %s214, %s230
    %p232 = scmp.eq.s32.totalorder %s21, 0
    %p233 = por %p231, %p232
    %s234 = ssub.s32 %s22, %s34
    %s235 = ssub.s32 %s23, %s30
    %s236 = sor.u32 %s234, %s235
    %p237 = scmp.eq.s32.totalorder %s236, 0
    %s239 = sadd.s32 %s238, 1
    %s240 = scalar_select %p237, %s238, %s239
    %p243 = pneg %p237
    %p244 = scmp.eq.s32.totalorder %s15, 1
    %p245 = por %p243, %p244
    %p246 = scmp.ne.s32.totalorder %s238, %s241
    %p247 = scmp.eq.s32.totalorder %s15, 0
    %p248 = por %p246, %p247
    %p249 = scmp.ne.s32.totalorder %s238, %s241
    %p250 = scmp.eq.s32.totalorder %s20, 1
    %p251 = por %p249, %p250
    %p252 = scmp.ne.s32.totalorder %s241, %s242
    %p253 = scmp.eq.s32.totalorder %s20, 0
    %p254 = por %p252, %p253
    %p255 = scmp.ne.s32.totalorder %s241, %s242
    %p256 = scmp.eq.s32.totalorder %s21, 1
    %p257 = por %p255, %p256
    %p259 = scmp.ne.s32.totalorder %s242, %s258
    %p260 = scmp.eq.s32.totalorder %s21, 0
    %p261 = por %p259, %p260
    %p262 = scmp.le.s32.totalorder 1, %s15
    %p263 = scmp.lt.s32.totalorder %s15, 3
    %p264 = pnand %p262, %p263
    %p265 = pneg %p264
    // Predicated region
    $region9: #{tpu_custom_call.1} parent=5 // pred_check
      _
    $region10: #{tpu_custom_call.1} parent=5 // pred_check_branch
      %267 = sbr.rel (%p264) target = $region12
    $region11: #{tpu_custom_call.1} parent=5 // pred_region
      %s268 = ssub.s32 %s15, 1
      // Predicated region
      $region13: #{tpu_custom_call.1} parent=11 // pred_check
        %p269 = pneg %p156
      $region14: #{tpu_custom_call.1} parent=11 // pred_check_branch
        %271 = sbr.rel (%p269) target = $region16
      $region15: #{tpu_custom_call.1} parent=11 // pred_region
        _
      $region16: #{tpu_custom_call.1} parent=11 // pred_fallthru
        _
      // Predicated region
      $region17: #{tpu_custom_call.1} parent=11 // pred_check
        %p272 = pneg %p177
      $region18: #{tpu_custom_call.1} parent=11 // pred_check_branch
        %274 = sbr.rel (%p272) target = $region20
      $region19: #{tpu_custom_call.1} parent=11 // pred_region
        _
      $region20: #{tpu_custom_call.1} parent=11 // pred_fallthru
        _
      // Predicated region
      $region21: #{tpu_custom_call.1} parent=11 // pred_check
        %p275 = pneg %p198
      $region22: #{tpu_custom_call.1} parent=11 // pred_check_branch
        %277 = sbr.rel (%p275) target = $region24
      $region23: #{tpu_custom_call.1} parent=11 // pred_region
        _
      $region24: #{tpu_custom_call.1} parent=11 // pred_fallthru
        _
    $region12: #{tpu_custom_call.1} parent=5 // pred_fallthru
      _
    %p278 = scmp.lt.s32.totalorder %s15, 2
    // Predicated region
    $region25: #{tpu_custom_call.1} parent=5 // pred_check
      %p279 = pneg %p278
    $region26: #{tpu_custom_call.1} parent=5 // pred_check_branch
      %281 = sbr.rel (%p279) target = $region28
    $region27: #{tpu_custom_call.1} parent=5 // pred_region
      // Predicated region
      $region29: #{tpu_custom_call.1} parent=27 // pred_check
        %p282 = pneg %p49
      $region30: #{tpu_custom_call.1} parent=27 // pred_check_branch
        %284 = sbr.rel (%p282) target = $region32
      $region31: #{tpu_custom_call.1} parent=27 // pred_region
        %p285 = scmp.lt.s32.totalorder %s22, 1
        %s286 = scalar_select %p285, %s22, 1
        %p287 = scmp.lt.s32.totalorder %s23, 0
        %s288 = scalar_select %p287, %s23, 0
        %s289 = sadd.s32 %s288, %s286
        %s290 = smul.addr %s289, 4
        %s291 = scalar_lea.vmem %s0, %s290
      $region32: #{tpu_custom_call.1} parent=27 // pred_fallthru
        _
      // Predicated region
      $region33: #{tpu_custom_call.1} parent=27 // pred_check
        %p292 = pneg %p75
      $region34: #{tpu_custom_call.1} parent=27 // pred_check_branch
        %294 = sbr.rel (%p292) target = $region36
      $region35: #{tpu_custom_call.1} parent=27 // pred_region
        %p295 = scmp.lt.s32.totalorder %s22, 1
        %s296 = scalar_select %p295, %s22, 1
        %s297 = smul.addr %s296, 8
        %s298 = scalar_lea.vmem %s1, %s297
      $region36: #{tpu_custom_call.1} parent=27 // pred_fallthru
        _
      // Predicated region
      $region37: #{tpu_custom_call.1} parent=27 // pred_check
        %p299 = pneg %p103
      $region38: #{tpu_custom_call.1} parent=27 // pred_check_branch
        %301 = sbr.rel (%p299) target = $region40
      $region39: #{tpu_custom_call.1} parent=27 // pred_region
        %p302 = scmp.lt.s32.totalorder %s22, 1
        %s303 = scalar_select %p302, %s22, 1
        %p304 = scmp.lt.s32.totalorder %s23, 0
        %s305 = scalar_select %p304, %s23, 0
        %s306 = sadd.s32 %s305, %s303
        %s307 = smul.addr %s306, 4
        %s308 = scalar_lea.vmem %s2, %s307
      $region40: #{tpu_custom_call.1} parent=27 // pred_fallthru
        _
      // Predicated region
      $region41: #{tpu_custom_call.1} parent=27 // pred_check
        %p309 = pneg %p129
      $region42: #{tpu_custom_call.1} parent=27 // pred_check_branch
        %311 = sbr.rel (%p309) target = $region44
      $region43: #{tpu_custom_call.1} parent=27 // pred_region
        %p312 = scmp.lt.s32.totalorder %s22, 1
        %s313 = scalar_select %p312, %s22, 1
        %s314 = smul.addr %s313, 8
        %s315 = scalar_lea.vmem %s3, %s314
      $region44: #{tpu_custom_call.1} parent=27 // pred_fallthru
        _
    $region28: #{tpu_custom_call.1} parent=5 // pred_fallthru
      _
    %p316 = scmp.le.s32.totalorder 1, %s15
    %p317 = scmp.lt.s32.totalorder %s15, 3
    %p318 = pnand %p316, %p317
    %p319 = pneg %p318
    // Predicated region
    $region45: #{tpu_custom_call.1} parent=5 // pred_check
      _
    $region46: #{tpu_custom_call.1} parent=5 // pred_check_branch
      %321 = sbr.rel (%p318) target = $region48
    $region47: #{tpu_custom_call.1} parent=5 // pred_region
      %s322 = ssub.s32 %s15, 1
      %p323 = scmp.lt.s32.totalorder %s24, 1
      %s324 = scalar_select %p323, %s24, 1
      %p325 = scmp.lt.s32.totalorder %s25, 0
      %s326 = scalar_select %p325, %s25, 0
      %s327 = sadd.s32 %s326, %s324
      %s328 = smul.addr %s327, 4
      %s329 = scalar_lea.vmem %s0, %s328
      %p330 = pneg %p55
      %p331 = pneg %p52
      %p332 = scmp.lt.s32.totalorder %s24, 1
      %s333 = scalar_select %p332, %s24, 1
      %s334 = smul.addr %s333, 8
      %s335 = scalar_lea.vmem %s1, %s334
      %p336 = pneg %p81
      %p337 = pneg %p78
      %p338 = scmp.lt.s32.totalorder %s24, 1
      %s339 = scalar_select %p338, %s24, 1
      %p340 = scmp.lt.s32.totalorder %s25, 0
      %s341 = scalar_select %p340, %s25, 0
      %s342 = sadd.s32 %s341, %s339
      %s343 = smul.addr %s342, 4
      %s344 = scalar_lea.vmem %s2, %s343
      %p345 = pneg %p109
      %p346 = pneg %p106
      %p347 = scmp.lt.s32.totalorder %s24, 1
      %s348 = scalar_select %p347, %s24, 1
      %s349 = smul.addr %s348, 8
      %s350 = scalar_lea.vmem %s3, %s349
      %p351 = pneg %p135
      %p352 = pneg %p132
      %p353 = pneg %p156
      %p354 = pneg %p153
      %p355 = pneg %p177
      %p356 = pneg %p174
      %p357 = pneg %p198
      %p358 = pneg %p195
      %p359 = pneg %p226
      %p360 = pneg %p223
      %p361 = scmp.lt.s32.totalorder %s24, 1
      %s362 = scalar_select %p361, %s24, 1
      %p363 = scmp.lt.s32.totalorder %s25, 0
      %s364 = scalar_select %p363, %s25, 0
      %s365 = smul.addr %s362, 4
      %s366 = sadd.s32 %s364, %s365
      %s367 = smul.addr %s366, 8
      %s368 = scalar_lea.vmem %s7, %s367
      %p369 = pneg %p254
      %p370 = pneg %p251
      %p371 = scmp.lt.s32.totalorder %s24, 1
      %s372 = scalar_select %p371, %s24, 1
      %p373 = scmp.lt.s32.totalorder %s25, 0
      %s374 = scalar_select %p373, %s25, 0
      %s375 = smul.addr %s374, 4
      %s376 = smul.addr %s372, 4
      %s377 = sadd.s32 %s375, %s376
      %s378 = smul.addr %s377, 8
      %s379 = scalar_lea.vmem %s8, %s378
      %p380 = scmp.lt.s32.totalorder %s24, 1
      %s381 = scalar_select %p380, %s24, 1
      %p382 = scmp.lt.s32.totalorder %s25, 0
      %s383 = scalar_select %p382, %s25, 0
      %s384 = sadd.s32 %s383, %s381
      %s385 = smul.addr %s384, 4
      %s386 = scalar_lea.vmem %s0, %s385
      %p387 = scmp.lt.s32.totalorder %s24, 1
      %s388 = scalar_select %p387, %s24, 1
      %s389 = smul.addr %s388, 8
      %s390 = scalar_lea.vmem %s1, %s389
      %p391 = scmp.lt.s32.totalorder %s24, 1
      %s392 = scalar_select %p391, %s24, 1
      %p393 = scmp.lt.s32.totalorder %s25, 0
      %s394 = scalar_select %p393, %s25, 0
      %s395 = sadd.s32 %s394, %s392
      %s396 = smul.addr %s395, 4
      %s397 = scalar_lea.vmem %s2, %s396
      %p398 = scmp.lt.s32.totalorder %s24, 1
      %s399 = scalar_select %p398, %s24, 1
      %s400 = smul.addr %s399, 8
      %s401 = scalar_lea.vmem %s3, %s400
      %p402 = scmp.lt.s32.totalorder %s24, 1
      %s403 = scalar_select %p402, %s24, 1
      %p404 = scmp.lt.s32.totalorder %s25, 0
      %s405 = scalar_select %p404, %s25, 0
      %s406 = smul.addr %s403, 4
      %s407 = sadd.s32 %s405, %s406
      %s408 = smul.addr %s407, 8
      %s409 = scalar_lea.vmem %s7, %s408
      %p410 = scmp.lt.s32.totalorder %s24, 1
      %s411 = scalar_select %p410, %s24, 1
      %p412 = scmp.lt.s32.totalorder %s25, 0
      %s413 = scalar_select %p412, %s25, 0
      %s414 = smul.addr %s413, 4
      %s415 = smul.addr %s411, 4
      %s416 = sadd.s32 %s414, %s415
      %s417 = smul.addr %s416, 8
      %s418 = scalar_lea.vmem %s8, %s417
      %v419 = vld [vmem:[%s401] sm:$0x3f]
      %v420 = vld [vmem:[%s386] sm:$0x7]
      %v421 = vld [vmem:[%s390] sm:$0xff]
      %423 = vset.pattern.permute.xlu0 0
      %424 = vperm.xlu0 %423, %v421
      %v425 = vpop.permute.xlu0 %424
      %v427 = vlaneseq
      %v428 = vshrl.u32 %v427, 7
      %v429 = vsub.s32 0, %v428
      %v430 = vrot.slane %v420, %v429
      %v431 = vsub.f32 %v425, %v430
      %v432 = vmul.f32 %v431, %v431
      %v433 = vadd.f32 %v432, 0.0
      %434 = vset.pattern.permute.xlu0 1
      %435 = vperm.xlu0 %434, %v421
      %v436 = vpop.permute.xlu0 %435
      %v438 = vlaneseq
      %v439 = vshrl.u32 %v438, 7
      %v440 = vsub.s32 1, %v439
      %v441 = vrot.slane %v420, %v440
      %v442 = vsub.f32 %v436, %v441
      %v443 = vmul.f32 %v442, %v442
      %v444 = vadd.f32 %v433, %v443
      %445 = vset.pattern.permute.xlu0 2
      %446 = vperm.xlu0 %445, %v421
      %v447 = vpop.permute.xlu0 %446
      %v449 = vlaneseq
      %v450 = vshrl.u32 %v449, 7
      %v451 = vsub.s32 2, %v450
      %v452 = vrot.slane %v420, %v451
      %v453 = vsub.f32 %v447, %v452
      %v454 = vmul.f32 %v453, %v453
      %v455 = vadd.f32 %v444, %v454
      %v456 = vlaneseq
      %v457 = vshrl.u32 %v456, 7
      %v459 = vand.u32 %v455, 4294967288
      %v460 = vor.u32 %v459, %v457
      %vm461 = vcmask 130048
      %v462 = vsel %vm461, %v460, 2147483647
      %v463 = vrot.slane %v462, 4
      %vm464 = vcmp.lt.s32.totalorder %v462, %v463
      %v465 = vsel %vm464, %v462, %v463
      %v466 = vrot.slane %v465, 2
      %vm467 = vcmp.lt.s32.totalorder %v465, %v466
      %v468 = vsel %vm467, %v465, %v466
      %v469 = vrot.slane %v468, 1
      %vm470 = vcmp.lt.s32.totalorder %v468, %v469
      %v471 = vsel %vm470, %v468, %v469
      %v472 = vand.u32 %v471, 7
      %v473 = vand.u32 %v471, 4294967288
      %v475 = vadd.f32 %v473, 1e-08
      %v476 = vrcp.pop %v475
      %v477 = vmul.f32 1.0, %v476
      %vm478 = vcmp.eq.s32.totalorder %v457, %v472
      %v479 = vsel %vm478, %v477, 0.0
      %v480 = vadd.f32 %v479, 0.0
      %v481 = vadd.f32 %v477, 0.0
      %v482 = vsel %vm478, 2147483647, %v460
      %v483 = vsel %vm461, %v482, 2147483647
      %v484 = vrot.slane %v483, 4
      %vm485 = vcmp.lt.s32.totalorder %v483, %v484
      %v486 = vsel %vm485, %v483, %v484
      %v487 = vrot.slane %v486, 2
      %vm488 = vcmp.lt.s32.totalorder %v486, %v487
      %v489 = vsel %vm488, %v486, %v487
      %v490 = vrot.slane %v489, 1
      %vm491 = vcmp.lt.s32.totalorder %v489, %v490
      %v492 = vsel %vm491, %v489, %v490
      %v493 = vand.u32 %v492, 7
      %v494 = vand.u32 %v492, 4294967288
      %v496 = vadd.f32 %v494, 1e-08
      %v497 = vrcp.pop %v496
      %v498 = vmul.f32 1.0, %v497
      %vm499 = vcmp.eq.s32.totalorder %v457, %v493
      %v500 = vsel %vm499, %v498, 0.0
      %v501 = vadd.f32 %v480, %v500
      %v502 = vadd.f32 %v481, %v498
      %v503 = vsel %vm499, 2147483647, %v482
      %v504 = vsel %vm461, %v503, 2147483647
      %v505 = vrot.slane %v504, 4
      %vm506 = vcmp.lt.s32.totalorder %v504, %v505
      %v507 = vsel %vm506, %v504, %v505
      %v508 = vrot.slane %v507, 2
      %vm509 = vcmp.lt.s32.totalorder %v507, %v508
      %v510 = vsel %vm509, %v507, %v508
      %v511 = vrot.slane %v510, 1
      %vm512 = vcmp.lt.s32.totalorder %v510, %v511
      %v513 = vsel %vm512, %v510, %v511
      %v514 = vand.u32 %v513, 7
      %v515 = vand.u32 %v513, 4294967288
      %v517 = vadd.f32 %v515, 1e-08
      %v518 = vrcp.pop %v517
      %v519 = vmul.f32 1.0, %v518
      %vm520 = vcmp.eq.s32.totalorder %v457, %v514
      %v521 = vsel %vm520, %v519, 0.0
      %v522 = vadd.f32 %v501, %v521
      %v523 = vadd.f32 %v502, %v519
      %vm524 = vcmask 64512
      %v526 = vsel %vm524, %v419, 0
      %528 = vmatprep.subr.mxu0 0.0
      %529 = vmatpush1.msra.mxu0 0.0
      %530 = vmatprep.subr.mxu0 0.0
      %531 = vmatpush1.msra.mxu0 0.0
      %532 = vmatprep.subr.mxu0 0.0
      %533 = vmatpush1.msra.mxu0 0.0
      %534 = vmatprep.subr.mxu0 0.0
      %535 = vmatpush1.msra.mxu0 0.0
      %536 = vmatprep.subr.mxu0 0.0
      %537 = vmatpush1.msra.mxu0 0.0
      %538 = vmatprep.subr.mxu0 0.0
      %539 = vmatpush1.msra.mxu0 0.0
      %540 = vmatprep.subr.mxu0 0.0
      %541 = vmatpush1.msra.mxu0 0.0
      %542 = vmatprep.subr.mxu0 0.0
      %543 = vmatpush1.msra.mxu0 0.0
      %544 = vmatprep.subr.mxu0 0.0
      %545 = vmatpush1.msra.mxu0 0.0
      %546 = vmatprep.subr.mxu0 0.0
      %547 = vmatpush1.msra.mxu0 0.0
      %548 = vmatprep.subr.mxu0 0.0
      %549 = vmatpush1.msra.mxu0 0.0
      %550 = vmatprep.subr.mxu0 0.0
      %551 = vmatpush1.msra.mxu0 0.0
      %552 = vmatprep.subr.mxu0 0.0
      %553 = vmatpush1.msra.mxu0 0.0
      %554 = vmatprep.subr.mxu0 0.0
      %555 = vmatpush1.msra.mxu0 0.0
      %556 = vmatprep.subr.mxu0 0.0
      %557 = vmatpush1.msra.mxu0 0.0
      %558 = vmatprep.subr.mxu0 0.0
      %559 = vmatpush1.msra.mxu0 %v522
      %560 = vmatprep.subr.mxu0 0.0
      %561 = vmatpush2.msra.mxu0 0.0
      %562 = vmatprep.subr.mxu0 0.0
      %563 = vmatpush2.msra.mxu0 0.0
      %564 = vmatprep.subr.mxu0 0.0
      %565 = vmatpush2.msra.mxu0 0.0
      %566 = vmatprep.subr.mxu0 0.0
      %567 = vmatpush2.msra.mxu0 0.0
      %568 = vmatprep.subr.mxu0 0.0
      %569 = vmatpush2.msra.mxu0 0.0
      %570 = vmatprep.subr.mxu0 0.0
      %571 = vmatpush2.msra.mxu0 0.0
      %572 = vmatprep.subr.mxu0 0.0
      %573 = vmatpush2.msra.mxu0 0.0
      %574 = vmatprep.subr.mxu0 0.0
      %575 = vmatpush2.msra.mxu0 0.0
      %576 = vmatprep.subr.mxu0 0.0
      %577 = vmatpush2.msra.mxu0 0.0
      %578 = vmatprep.subr.mxu0 0.0
      %579 = vmatpush2.msra.mxu0 0.0
      %580 = vmatprep.subr.mxu0 0.0
      %581 = vmatpush2.msra.mxu0 0.0
      %582 = vmatprep.subr.mxu0 0.0
      %583 = vmatpush2.msra.mxu0 0.0
      %584 = vmatprep.subr.mxu0 0.0
      %585 = vmatpush2.msra.mxu0 0.0
      %586 = vmatprep.subr.mxu0 0.0
      %587 = vmatpush2.msra.mxu0 0.0
      %588 = vmatprep.subr.mxu0 0.0
      %589 = vmatpush2.msra.mxu0 0.0
      %590 = vmatprep.subr.mxu0 0.0
      %591 = vmatpush2.msra.mxu0 0.0
      %592 = vmatprep.mubr.f32.mxu0 0.0
      %593 = vmatmul.mubr.f32.gmra.mxu0 %v526
      %v594 = vpop.f32.mrf.mxu0
      %v595 = vadd.f32 0.0, %v594
      %v596 = vpop.f32.mrf.mxu0
      %597 = vdwg.mxu0
      %v598 = vrcp.pop %v523
      %v599 = vmul.f32 1.0, %v598
      %v600 = vmul.f32 %v595, %v599
      %v601 = vld [vmem:[%s5] sm:$0xff]
      %v602 = vld [vmem:[%s5 + $0x8] sm:$0xff]
      %v603 = vld [vmem:[%s5 + $0x10] sm:$0xff]
      %v604 = vld [vmem:[%s5 + $0x18] sm:$0xff]
      %v605 = vld [vmem:[%s4] sm:$0xff]
      %v606 = vld [vmem:[%s4 + $0x8] sm:$0xff]
      %v607 = vld [vmem:[%s4 + $0x10] sm:$0xff]
      %v608 = vld [vmem:[%s4 + $0x18] sm:$0xff]
      %v609 = vld [vmem:[%s397] sm:$0xf]
      %vm610 = vcmask 31744
      %v612 = vsel %vm610, %v605, 0
      %v615 = vsel %vm610, %v606, 0
      %v618 = vsel %vm610, %v607, 0
      %v621 = vsel %vm610, %v608, 0
      %vm623 = vcmask 1043456
      %v625 = vsel %vm623, %v609, 0
      %627 = vmatprep.subr.mxu0 0.0
      %628 = vmatpush1.msra.mxu0 0.0
      %629 = vmatprep.subr.mxu0 0.0
      %630 = vmatpush1.msra.mxu0 0.0
      %631 = vmatprep.subr.mxu0 0.0
      %632 = vmatpush1.msra.mxu0 0.0
      %633 = vmatprep.subr.mxu0 0.0
      %634 = vmatpush1.msra.mxu0 0.0
      %635 = vmatprep.subr.mxu0 0.0
      %636 = vmatpush1.msra.mxu0 0.0
      %637 = vmatprep.subr.mxu0 0.0
      %638 = vmatpush1.msra.mxu0 0.0
      %639 = vmatprep.subr.mxu0 0.0
      %640 = vmatpush1.msra.mxu0 0.0
      %641 = vmatprep.subr.mxu0 0.0
      %642 = vmatpush1.msra.mxu0 0.0
      %643 = vmatprep.subr.mxu0 0.0
      %644 = vmatpush1.msra.mxu0 0.0
      %645 = vmatprep.subr.mxu0 0.0
      %646 = vmatpush1.msra.mxu0 0.0
      %647 = vmatprep.subr.mxu0 0.0
      %648 = vmatpush1.msra.mxu0 0.0
      %649 = vmatprep.subr.mxu0 0.0
      %650 = vmatpush1.msra.mxu0 0.0
      %651 = vmatprep.subr.mxu0 0.0
      %652 = vmatpush1.msra.mxu0 0.0
      %653 = vmatprep.subr.mxu0 0.0
      %654 = vmatpush1.msra.mxu0 0.0
      %655 = vmatprep.subr.mxu0 0.0
      %656 = vmatpush1.msra.mxu0 0.0
      %657 = vmatprep.subr.mxu0 0.0
      %658 = vmatpush1.msra.mxu0 %v625
      %659 = vmatprep.subr.mxu0 0.0
      %660 = vmatpush2.msra.mxu0 0.0
      %661 = vmatprep.subr.mxu0 0.0
      %662 = vmatpush2.msra.mxu0 0.0
      %663 = vmatprep.subr.mxu0 0.0
      %664 = vmatpush2.msra.mxu0 0.0
      %665 = vmatprep.subr.mxu0 0.0
      %666 = vmatpush2.msra.mxu0 0.0
      %667 = vmatprep.subr.mxu0 0.0
      %668 = vmatpush2.msra.mxu0 0.0
      %669 = vmatprep.subr.mxu0 0.0
      %670 = vmatpush2.msra.mxu0 0.0
      %671 = vmatprep.subr.mxu0 0.0
      %672 = vmatpush2.msra.mxu0 0.0
      %673 = vmatprep.subr.mxu0 0.0
      %674 = vmatpush2.msra.mxu0 0.0
      %675 = vmatprep.subr.mxu0 0.0
      %676 = vmatpush2.msra.mxu0 0.0
      %677 = vmatprep.subr.mxu0 0.0
      %678 = vmatpush2.msra.mxu0 0.0
      %679 = vmatprep.subr.mxu0 0.0
      %680 = vmatpush2.msra.mxu0 0.0
      %681 = vmatprep.subr.mxu0 0.0
      %682 = vmatpush2.msra.mxu0 0.0
      %683 = vmatprep.subr.mxu0 0.0
      %684 = vmatpush2.msra.mxu0 0.0
      %685 = vmatprep.subr.mxu0 0.0
      %686 = vmatpush2.msra.mxu0 0.0
      %687 = vmatprep.subr.mxu0 0.0
      %688 = vmatpush2.msra.mxu0 0.0
      %689 = vmatprep.subr.mxu0 0.0
      %690 = vmatpush2.msra.mxu0 0.0
      %691 = vmatprep.mubr.f32.mxu0 0.0
      %692 = vmatmul.mubr.f32.gmra.mxu0 %v612
      %v693 = vpop.f32.mrf.mxu0
      %v694 = vadd.f32 0.0, %v693
      %v695 = vpop.f32.mrf.mxu0
      %696 = vmatprep.mubr.f32.mxu0 0.0
      %697 = vmatmul.mubr.f32.gmra.mxu0 %v615
      %v698 = vpop.f32.mrf.mxu0
      %v699 = vadd.f32 0.0, %v698
      %v700 = vpop.f32.mrf.mxu0
      %701 = vmatprep.mubr.f32.mxu0 0.0
      %702 = vmatmul.mubr.f32.gmra.mxu0 %v618
      %v703 = vpop.f32.mrf.mxu0
      %v704 = vadd.f32 0.0, %v703
      %v705 = vpop.f32.mrf.mxu0
      %706 = vmatprep.mubr.f32.mxu0 0.0
      %707 = vmatmul.mubr.f32.gmra.mxu0 %v621
      %v708 = vpop.f32.mrf.mxu0
      %v709 = vadd.f32 0.0, %v708
      %v710 = vpop.f32.mrf.mxu0
      %711 = vdwg.mxu0
      %vm712 = vcmask 48128
      %v714 = vsel %vm712, %v601, 0
      %v717 = vsel %vm712, %v602, 0
      %v720 = vsel %vm712, %v603, 0
      %v723 = vsel %vm712, %v604, 0
      %vm725 = vcmask 1045504
      %v727 = vsel %vm725, %v600, 0
      %729 = vmatprep.subr.mxu0 0.0
      %730 = vmatpush1.msra.mxu0 0.0
      %731 = vmatprep.subr.mxu0 0.0
      %732 = vmatpush1.msra.mxu0 0.0
      %733 = vmatprep.subr.mxu0 0.0
      %734 = vmatpush1.msra.mxu0 0.0
      %735 = vmatprep.subr.mxu0 0.0
      %736 = vmatpush1.msra.mxu0 0.0
      %737 = vmatprep.subr.mxu0 0.0
      %738 = vmatpush1.msra.mxu0 0.0
      %739 = vmatprep.subr.mxu0 0.0
      %740 = vmatpush1.msra.mxu0 0.0
      %741 = vmatprep.subr.mxu0 0.0
      %742 = vmatpush1.msra.mxu0 0.0
      %743 = vmatprep.subr.mxu0 0.0
      %744 = vmatpush1.msra.mxu0 0.0
      %745 = vmatprep.subr.mxu0 0.0
      %746 = vmatpush1.msra.mxu0 0.0
      %747 = vmatprep.subr.mxu0 0.0
      %748 = vmatpush1.msra.mxu0 0.0
      %749 = vmatprep.subr.mxu0 0.0
      %750 = vmatpush1.msra.mxu0 0.0
      %751 = vmatprep.subr.mxu0 0.0
      %752 = vmatpush1.msra.mxu0 0.0
      %753 = vmatprep.subr.mxu0 0.0
      %754 = vmatpush1.msra.mxu0 0.0
      %755 = vmatprep.subr.mxu0 0.0
      %756 = vmatpush1.msra.mxu0 0.0
      %757 = vmatprep.subr.mxu0 0.0
      %758 = vmatpush1.msra.mxu0 0.0
      %759 = vmatprep.subr.mxu0 0.0
      %760 = vmatpush1.msra.mxu0 %v727
      %761 = vmatprep.subr.mxu0 0.0
      %762 = vmatpush2.msra.mxu0 0.0
      %763 = vmatprep.subr.mxu0 0.0
      %764 = vmatpush2.msra.mxu0 0.0
      %765 = vmatprep.subr.mxu0 0.0
      %766 = vmatpush2.msra.mxu0 0.0
      %767 = vmatprep.subr.mxu0 0.0
      %768 = vmatpush2.msra.mxu0 0.0
      %769 = vmatprep.subr.mxu0 0.0
      %770 = vmatpush2.msra.mxu0 0.0
      %771 = vmatprep.subr.mxu0 0.0
      %772 = vmatpush2.msra.mxu0 0.0
      %773 = vmatprep.subr.mxu0 0.0
      %774 = vmatpush2.msra.mxu0 0.0
      %775 = vmatprep.subr.mxu0 0.0
      %776 = vmatpush2.msra.mxu0 0.0
      %777 = vmatprep.subr.mxu0 0.0
      %778 = vmatpush2.msra.mxu0 0.0
      %779 = vmatprep.subr.mxu0 0.0
      %780 = vmatpush2.msra.mxu0 0.0
      %781 = vmatprep.subr.mxu0 0.0
      %782 = vmatpush2.msra.mxu0 0.0
      %783 = vmatprep.subr.mxu0 0.0
      %784 = vmatpush2.msra.mxu0 0.0
      %785 = vmatprep.subr.mxu0 0.0
      %786 = vmatpush2.msra.mxu0 0.0
      %787 = vmatprep.subr.mxu0 0.0
      %788 = vmatpush2.msra.mxu0 0.0
      %789 = vmatprep.subr.mxu0 0.0
      %790 = vmatpush2.msra.mxu0 0.0
      %791 = vmatprep.subr.mxu0 0.0
      %792 = vmatpush2.msra.mxu0 0.0
      %793 = vmatprep.mubr.f32.mxu0 0.0
      %794 = vmatmul.mubr.f32.gmra.mxu0 %v714
      %v795 = vpop.f32.mrf.mxu0
      %v796 = vadd.f32 %v694, %v795
      %v797 = vpop.f32.mrf.mxu0
      %798 = vmatprep.mubr.f32.mxu0 0.0
      %799 = vmatmul.mubr.f32.gmra.mxu0 %v717
      %v800 = vpop.f32.mrf.mxu0
      %v801 = vadd.f32 %v699, %v800
      %v802 = vpop.f32.mrf.mxu0
      %803 = vmatprep.mubr.f32.mxu0 0.0
      %804 = vmatmul.mubr.f32.gmra.mxu0 %v720
      %v805 = vpop.f32.mrf.mxu0
      %v806 = vadd.f32 %v704, %v805
      %v807 = vpop.f32.mrf.mxu0
      %808 = vmatprep.mubr.f32.mxu0 0.0
      %809 = vmatmul.mubr.f32.gmra.mxu0 %v723
      %v810 = vpop.f32.mrf.mxu0
      %v811 = vadd.f32 %v709, %v810
      %v812 = vpop.f32.mrf.mxu0
      %813 = vdwg.mxu0
      %v814 = vld [vmem:[%s6] sm:$0xff]
      %v815 = vld [vmem:[%s6 + $0x8] sm:$0xff]
      %v816 = vld [vmem:[%s6 + $0x10] sm:$0xff]
      %v817 = vld [vmem:[%s6 + $0x18] sm:$0xff]
      %819 = vset.pattern.permute.xlu0 0
      %820 = vperm.xlu0 %819, %v814
      %v821 = vpop.permute.xlu0 %820
      %824 = vset.pattern.permute.xlu0 0
      %825 = vperm.xlu0 %824, %v815
      %v826 = vpop.permute.xlu0 %825
      %829 = vset.pattern.permute.xlu0 0
      %830 = vperm.xlu0 %829, %v816
      %v831 = vpop.permute.xlu0 %830
      %834 = vset.pattern.permute.xlu0 0
      %835 = vperm.xlu0 %834, %v817
      %v836 = vpop.permute.xlu0 %835
      %v838 = vadd.f32 %v796, %v821
      %v839 = vadd.f32 %v801, %v826
      %v840 = vadd.f32 %v806, %v831
      %v841 = vadd.f32 %v811, %v836
      %842 = vst.msk [vmem:[%s409] sm:$0xff] %vm461, %v838
      %843 = vst.msk [vmem:[%s409 + $0x8] sm:$0xff] %vm461, %v839
      %844 = vst.msk [vmem:[%s409 + $0x10] sm:$0xff] %vm461, %v840
      %845 = vst.msk [vmem:[%s409 + $0x18] sm:$0xff] %vm461, %v841
      %v846 = vsel %vm461, %v838, 0.0
      %847 = vadd.xlane.f32.xlu0 %v846
      %v848 = vpop.xlane.xlu0 %847
      %v849 = vsel %vm461, %v839, 0.0
      %850 = vadd.xlane.f32.xlu0 %v849
      %v851 = vpop.xlane.xlu0 %850
      %v852 = vsel %vm461, %v840, 0.0
      %853 = vadd.xlane.f32.xlu0 %v852
      %v854 = vpop.xlane.xlu0 %853
      %v855 = vsel %vm461, %v841, 0.0
      %856 = vadd.xlane.f32.xlu0 %v855
      %v857 = vpop.xlane.xlu0 %856
      %v858 = vmul.f32 %v838, %v838
      %v859 = vmul.f32 %v839, %v839
      %v860 = vmul.f32 %v840, %v840
      %v861 = vmul.f32 %v841, %v841
      %v862 = vsel %vm461, %v858, 0.0
      %863 = vadd.xlane.f32.xlu0 %v862
      %v864 = vpop.xlane.xlu0 %863
      %v865 = vsel %vm461, %v859, 0.0
      %866 = vadd.xlane.f32.xlu0 %v865
      %v867 = vpop.xlane.xlu0 %866
      %v868 = vsel %vm461, %v860, 0.0
      %869 = vadd.xlane.f32.xlu0 %v868
      %v870 = vpop.xlane.xlu0 %869
      %v871 = vsel %vm461, %v861, 0.0
      %872 = vadd.xlane.f32.xlu0 %v871
      %v873 = vpop.xlane.xlu0 %872
      %vm874 = vcmask 7168
      %v875 = vsel %vm874, %v848, %v864
      %v876 = vsel %vm874, %v851, %v867
      %v877 = vsel %vm874, %v854, %v870
      %v878 = vsel %vm874, %v857, %v873
      %vm879 = vcmask 15360
      %880 = vst.msk [vmem:[%s418] sm:$0xff] %vm879, %v875
      %881 = vst.msk [vmem:[%s418 + $0x8] sm:$0xff] %vm879, %v876
      %882 = vst.msk [vmem:[%s418 + $0x10] sm:$0xff] %vm879, %v877
      %883 = vst.msk [vmem:[%s418 + $0x18] sm:$0xff] %vm879, %v878
      %p884 = scmp.lt.s32.totalorder %s24, 1
      %s885 = scalar_select %p884, %s24, 1
      %p886 = scmp.lt.s32.totalorder %s25, 0
      %s887 = scalar_select %p886, %s25, 0
      %s888 = smul.addr %s885, 4
      %s889 = sadd.s32 %s887, %s888
      %s890 = smul.addr %s889, 8
      %s891 = scalar_lea.vmem %s7, %s890
      %p892 = scmp.lt.s32.totalorder %s24, 1
      %s893 = scalar_select %p892, %s24, 1
      %p894 = scmp.lt.s32.totalorder %s25, 0
      %s895 = scalar_select %p894, %s25, 0
      %s896 = smul.addr %s895, 4
      %s897 = smul.addr %s893, 4
      %s898 = sadd.s32 %s896, %s897
      %s899 = smul.addr %s898, 8
      %s900 = scalar_lea.vmem %s8, %s899
      // Predicated region
      $region49: #{tpu_custom_call.1} parent=47 // pred_check
        %p901 = pneg %p223
      $region50: #{tpu_custom_call.1} parent=47 // pred_check_branch
        %903 = sbr.rel (%p901) target = $region52
      $region51: #{tpu_custom_call.1} parent=47 // pred_region
        _
      $region52: #{tpu_custom_call.1} parent=47 // pred_fallthru
        _
      // Predicated region
      $region53: #{tpu_custom_call.1} parent=47 // pred_check
        %p904 = pneg %p251
      $region54: #{tpu_custom_call.1} parent=47 // pred_check_branch
        %906 = sbr.rel (%p904) target = $region56
      $region55: #{tpu_custom_call.1} parent=47 // pred_region
        _
      $region56: #{tpu_custom_call.1} parent=47 // pred_fallthru
        _
    $region48: #{tpu_custom_call.1} parent=5 // pred_fallthru
      _
    %p907 = scmp.le.s32.totalorder 2, %s15
    // Predicated region
    $region57: #{tpu_custom_call.1} parent=5 // pred_check
      %p908 = pneg %p907
    $region58: #{tpu_custom_call.1} parent=5 // pred_check_branch
      %910 = sbr.rel (%p908) target = $region60
    $region59: #{tpu_custom_call.1} parent=5 // pred_region
      %s911 = ssub.s32 %s15, 2
      // Predicated region
      $region61: #{tpu_custom_call.1} parent=59 // pred_check
        %p912 = pneg %p229
      $region62: #{tpu_custom_call.1} parent=59 // pred_check_branch
        %914 = sbr.rel (%p912) target = $region64
      $region63: #{tpu_custom_call.1} parent=59 // pred_region
        %p915 = scmp.lt.s32.totalorder %s26, 1
        %s916 = scalar_select %p915, %s26, 1
        %p917 = scmp.lt.s32.totalorder %s27, 0
        %s918 = scalar_select %p917, %s27, 0
        %s919 = smul.addr %s916, 4
        %s920 = sadd.s32 %s918, %s919
        %s921 = smul.addr %s920, 8
        %s922 = scalar_lea.vmem %s7, %s921
      $region64: #{tpu_custom_call.1} parent=59 // pred_fallthru
        _
      // Predicated region
      $region65: #{tpu_custom_call.1} parent=59 // pred_check
        %p923 = pneg %p257
      $region66: #{tpu_custom_call.1} parent=59 // pred_check_branch
        %925 = sbr.rel (%p923) target = $region68
      $region67: #{tpu_custom_call.1} parent=59 // pred_region
        %p926 = scmp.lt.s32.totalorder %s26, 1
        %s927 = scalar_select %p926, %s26, 1
        %p928 = scmp.lt.s32.totalorder %s27, 0
        %s929 = scalar_select %p928, %s27, 0
        %s930 = smul.addr %s929, 4
        %s931 = smul.addr %s927, 4
        %s932 = sadd.s32 %s930, %s931
        %s933 = smul.addr %s932, 8
        %s934 = scalar_lea.vmem %s8, %s933
      $region68: #{tpu_custom_call.1} parent=59 // pred_fallthru
        _
    $region60: #{tpu_custom_call.1} parent=5 // pred_fallthru
      _
  $region6: #{tpu_custom_call.1} parent=0 // loop_footer
    %s19 = sadd.s32 1, %s15
  $region7: #{tpu_custom_call.1} parent=0 // loop_footer_branch
    %14 = sbr.rel target = $region3
  $region8: #{tpu_custom_call.1} parent=0 // loop_exit
    _

</llo_original>
